<compile_context>
chip_gen: v5e
topology: v5e:2x2
jax: 0.10.0
libtpu: 0.0.40
codegen_flags: <defaults>
</compile_context>

<pallas_src>
import functools
from typing import NamedTuple

import jax
import jax.numpy as jnp
from jax.experimental import pallas as pl
from jax.experimental.pallas import tpu as pltpu


def _round_up(n, m):
    return (n + m - 1) // m * m


def _cdiv(a, b):
    return -(-a // b)


def _tpu_vmem_bytes():
    """Best-effort query of per-core VMEM capacity; conservative fallback."""
    default = 64 * 2 ** 20
    try:
        info = pltpu.get_tpu_info()
    except Exception:
        return default
    for attr in ("vmem_capacity_bytes", "vmem_bytes", "vmem_size_bytes"):
        v = getattr(info, attr, None)
        if v:
            return int(v)
    return default


class PreparedParams(NamedTuple):
    w1: jax.Array      # (d_in_p, num_k*tk) bf16
    b1: jax.Array      # (1, num_k*tk) f32
    w2: jax.Array      # (num_k*tk, d_out_p) bf16
    b2: jax.Array      # (1, d_out_p) f32
    gamma: jax.Array   # (1, d_out_p) f32
    beta: jax.Array    # (1, d_out_p) f32
    d_in: int
    d_in_p: int
    d_out: int
    d_out_p: int
    tk: int
    num_k: int
    vmem_limit: int


def prepare_params(params, *, tile_b=256, max_tk=None):
    """One-time weight padding / bf16 cast + hidden-dim chunking plan.

    Call once at init; the per-forward path does not touch the weights again.
    """
    w1, b1, w2, b2, gamma, beta = params
    d_in, d_hid = w1.shape
    d_out = w2.shape[1]
    d_in_p = _round_up(d_in, 128)
    d_out_p = _round_up(d_out, 128)
    d_hid_p = _round_up(d_hid, 128)

    # Per-generation scoped-VMEM budget: ~48 MiB on 64 MiB parts (v7x),
    # ~100 MiB on 128 MiB parts (v5e/v6e).
    vmem_cap = _tpu_vmem_bytes()
    budget = int(max(32 * 2 ** 20, min(vmem_cap - 16 * 2 ** 20, 100 * 2 ** 20)))

    tile_b = max(16, _round_up(tile_b, 16))

    def vmem_need(tk):
        num_k = _cdiv(d_hid_p, tk)
        wbuf = 1 if num_k == 1 else 2          # resident vs double-buffered chunks
        weights = wbuf * ((d_in_p * tk + tk * d_out_p) * 2 + tk * 4)
        consts = 3 * d_out_p * 4               # b2, gamma, beta
        xio = 2 * tile_b * d_in_p * 4 + 2 * tile_b * d_out_p * 4
        acc = 0 if num_k == 1 else tile_b * d_out_p * 4
        live = tile_b * tk * (4 + 2) + tile_b * d_out_p * 4   # h f32+bf16, dot2 out
        return weights + consts + xio + acc + live

    tk = d_hid_p if max_tk is None else min(d_hid_p, _round_up(max_tk, 128))
    while tk > 128 and vmem_need(tk) > budget:
        tk = _round_up(max(128, tk // 2), 128)
    num_k = _cdiv(d_hid_p, tk)
    d_hid_pp = num_k * tk                      # hidden dim padded to chunk multiple

    w1p = jnp.pad(w1, ((0, d_in_p - d_in), (0, d_hid_pp - d_hid))).astype(jnp.bfloat16)
    b1p = jnp.pad(b1.reshape(1, -1), ((0, 0), (0, d_hid_pp - d_hid))).astype(jnp.float32)
    w2p = jnp.pad(w2, ((0, d_hid_pp - d_hid), (0, d_out_p - d_out))).astype(jnp.bfloat16)
    b2p = jnp.pad(b2.reshape(1, -1), ((0, 0), (0, d_out_p - d_out))).astype(jnp.float32)
    gp = jnp.pad(gamma.reshape(1, -1), ((0, 0), (0, d_out_p - d_out))).astype(jnp.float32)
    btp = jnp.pad(beta.reshape(1, -1), ((0, 0), (0, d_out_p - d_out))).astype(jnp.float32)

    return PreparedParams(w1p, b1p, w2p, b2p, gp, btp,
                          d_in, d_in_p, d_out, d_out_p, tk, num_k, budget)


def _fusion_kernel(x_ref, w1_ref, b1_ref, w2_ref, b2_ref, g_ref, beta_ref,
                   o_ref, *scratch, eps, d_out_real, num_k):
    # x: (TB, d_in_p) f32; w1 chunk: (d_in_p, tk) bf16; w2 chunk: (tk, d_out_p) bf16.
    x = x_ref[...].astype(jnp.bfloat16)

    # Linear1 chunk + ReLU; end the f32 live range immediately (one expression).
    h = jnp.maximum(
        jnp.dot(x, w1_ref[...], preferred_element_type=jnp.float32) + b1_ref[...],
        0.0).astype(jnp.bfloat16)
    part = jnp.dot(h, w2_ref[...], preferred_element_type=jnp.float32)

    def _finish(y):
        # LayerNorm over the true (unpadded) feature count, biased variance.
        d_out_pad = y.shape[-1]
        if d_out_pad == d_out_real:
            mean = jnp.mean(y, axis=-1, keepdims=True)
            d = y - mean
            var = jnp.mean(d * d, axis=-1, keepdims=True)
        else:
            lane = jax.lax.broadcasted_iota(jnp.int32, y.shape, 1)
            mask = (lane < d_out_real).astype(jnp.float32)
            inv_n = 1.0 / float(d_out_real)
            # Padded lanes of y are exactly zero (zero-padded W2/b2) -> no mask on mean.
            mean = jnp.sum(y, axis=-1, keepdims=True) * inv_n
            d = (y - mean) * mask
            var = jnp.sum(d * d, axis=-1, keepdims=True) * inv_n
        yn = d * jax.lax.rsqrt(var + eps) * g_ref[...] + beta_ref[...]
        # Final ReLU (Dropout(0.2) = identity in eval mode).
        o_ref[...] = jnp.maximum(yn, 0.0).astype(o_ref.dtype)

    if num_k == 1:
        _finish(part + b2_ref[...])
    else:
        acc_ref = scratch[0]
        k = pl.program_id(1)

        @pl.when(k == 0)
        def _():
            acc_ref[...] = part

        @pl.when(k > 0)
        def _():
            acc_ref[...] += part

        @pl.when(k == num_k - 1)
        def _():
            _finish(acc_ref[...] + b2_ref[...])


def second_fusion_layer(x, prepared: PreparedParams, *, tile_b=256, eps=1e-5,
                        out_dtype=jnp.float32):
    """x: (B, d_in) float32. Returns (B, 2H) in out_dtype (f32 matches PyTorch)."""
    B, d_in = x.shape
    assert d_in == prepared.d_in, "input feature dim does not match prepared params"
    d_in_p, d_out, d_out_p = prepared.d_in_p, prepared.d_out, prepared.d_out_p
    tk, num_k = prepared.tk, prepared.num_k
    d_hid_pp = prepared.w1.shape[1]

    # Batch tiling: cap the tile so the "parallel" axis has >= ~4 grid steps
    # (keeps both v7x TensorCores busy); tiny batches collapse gracefully.
    tile_b = max(16, _round_up(tile_b, 16))
    tile_cap = max(16, _round_up(_cdiv(B, 4), 16))
    tile_b_eff = min(tile_b, tile_cap, _round_up(B, 16))
    b_p = _round_up(B, tile_b_eff)

    # x stays f32; pad only when required, cast to bf16 inside the kernel.
    pad_b, pad_d = b_p - B, d_in_p - d_in
    x_p = jnp.pad(x, ((0, pad_b), (0, pad_d))) if (pad_b or pad_d) else x

    kernel = functools.partial(_fusion_kernel, eps=eps, d_out_real=d_out, num_k=num_k)

    # Grid-invariant operands single-buffer (no re-DMA: constant index_map).
    resident = dict(pipeline_mode=pl.Buffered(1))
    # Weight chunks are constant only when num_k == 1; otherwise keep default
    # double-buffering so chunk DMAs pipeline against compute.
    w_mode = resident if num_k == 1 else {}

    scratch = [] if num_k == 1 else [pltpu.VMEM((tile_b_eff, d_out_p), jnp.float32)]

    b_tiles = b_p // tile_b_eff
    grid = (b_tiles, num_k)

    out_bytes = jnp.dtype(out_dtype).itemsize
    flops = 2 * b_p * d_in_p * d_hid_pp + 2 * b_p * d_hid_pp * d_out_p
    weight_bytes = ((prepared.w1.size + prepared.w2.size) * 2
                    + (prepared.b1.size + prepared.b2.size
                       + prepared.gamma.size + prepared.beta.size) * 4)
    weight_passes = 1 if num_k == 1 else b_tiles
    bytes_accessed = (x_p.size * x_p.dtype.itemsize
                      + weight_bytes * weight_passes
                      + b_p * d_out_p * out_bytes)
    cost = pl.CostEstimate(flops=int(flops), transcendentals=int(b_p),
                           bytes_accessed=int(bytes_accessed))

    out_p = pl.pallas_call(
        kernel,
        out_shape=jax.ShapeDtypeStruct((b_p, d_out_p), out_dtype),
        grid_spec=pltpu.PrefetchScalarGridSpec(
            num_scalar_prefetch=0,
            grid=grid,
            in_specs=[
                pl.BlockSpec((tile_b_eff, d_in_p), lambda i, k: (i, 0)),          # x
                pl.BlockSpec((d_in_p, tk), lambda i, k: (0, k), **w_mode),        # W1 chunk
                pl.BlockSpec((1, tk), lambda i, k: (0, k), **w_mode),             # b1 chunk
                pl.BlockSpec((tk, d_out_p), lambda i, k: (k, 0), **w_mode),       # W2 chunk
                pl.BlockSpec((1, d_out_p), lambda i, k: (0, 0), **resident),      # b2
                pl.BlockSpec((1, d_out_p), lambda i, k: (0, 0), **resident),      # gamma
                pl.BlockSpec((1, d_out_p), lambda i, k: (0, 0), **resident),      # beta
            ],
            out_specs=pl.BlockSpec((tile_b_eff, d_out_p), lambda i, k: (i, 0)),
            scratch_shapes=scratch,
        ),
        compiler_params=pltpu.CompilerParams(
            dimension_semantics=("parallel", "arbitrary"),
            vmem_limit_bytes=prepared.vmem_limit),
        cost_estimate=cost,
    )(x_p, prepared.w1, prepared.b1, prepared.w2, prepared.b2,
      prepared.gamma, prepared.beta)

    if b_p == B and d_out_p == d_out:
        return out_p
    return out_p[:B, :d_out]


def init_params(key, hidden_dim):
    """Deterministic parameter init mirroring the PyTorch module's shapes."""
    d_in = 3 * hidden_dim + hidden_dim + 16 + hidden_dim // 4
    d_hid = 4 * hidden_dim
    d_out = 2 * hidden_dim
    k1, k2, k3, k4 = jax.random.split(key, 4)
    lim1 = 1.0 / jnp.sqrt(d_in)
    lim2 = 1.0 / jnp.sqrt(d_hid)
    w1 = jax.random.uniform(k1, (d_in, d_hid), jnp.float32, -lim1, lim1)
    b1 = jax.random.uniform(k2, (1, d_hid), jnp.float32, -lim1, lim1)
    w2 = jax.random.uniform(k3, (d_hid, d_out), jnp.float32, -lim2, lim2)
    b2 = jax.random.uniform(k4, (1, d_out), jnp.float32, -lim2, lim2)
    gamma = jnp.ones((1, d_out), jnp.float32)   # LayerNorm weight
    beta = jnp.zeros((1, d_out), jnp.float32)   # LayerNorm bias
    return (w1, b1, w2, b2, gamma, beta)


def reference(x, params, eps=1e-5):
    """Pure-JAX f32 reference (eval-mode dropout = identity)."""
    w1, b1, w2, b2, gamma, beta = params
    h = jnp.maximum(x @ w1 + b1, 0.0)
    y = h @ w2 + b2
    mean = jnp.mean(y, axis=-1, keepdims=True)
    var = jnp.mean(jnp.square(y - mean), axis=-1, keepdims=True)
    yn = (y - mean) / jnp.sqrt(var + eps) * gamma + beta
    return jnp.maximum(yn, 0.0)


def _max_rel_err(out, ref):
    return float(jnp.max(jnp.abs(out - ref) / jnp.maximum(jnp.abs(ref), 1.0)))


if __name__ == "__main__":
    key = jax.random.PRNGKey(0)
    kx1, kp1, kx2, kp2 = jax.random.split(key, 4)

    # --- Case 1: H=32 (d_in=152 -> feature padding, d_out=64 -> masked LN),
    #             single hidden chunk (num_k=1), 3 batch grid steps. ---
    H1 = 32
    d_in1 = 3 * H1 + H1 + 16 + H1 // 4            # 152
    B1 = 80
    x1 = jax.random.normal(kx1, (B1, d_in1), jnp.float32)
    params1 = init_params(kp1, H1)
    prepared1 = prepare_params(params1, tile_b=32)
    out1 = jax.block_until_ready(second_fusion_layer(x1, params1 and prepared1, tile_b=32))
    ref1 = reference(x1, params1)
    assert out1.shape == (B1, 2 * H1)
    rel1 = _max_rel_err(out1, ref1)
    assert rel1 < 5e-2, f"case1 mismatch vs reference, max rel err = {rel1}"

    # --- Case 2: H=64 with forced tk=128 -> num_k=2, exercising the K-tiled
    #             accumulator (pl.when init/finalize) path. ---
    H2 = 64
    d_in2 = 3 * H2 + H2 + 16 + H2 // 4            # 288
    B2 = 40
    x2 = jax.random.normal(kx2, (B2, d_in2), jnp.float32)
    params2 = init_params(kp2, H2)
    prepared2 = prepare_params(params2, tile_b=16, max_tk=128)
    assert prepared2.num_k == 2
    out2 = jax.block_until_ready(second_fusion_layer(x2, prepared2, tile_b=16))
    ref2 = reference(x2, params2)
    assert out2.shape == (B2, 2 * H2)
    rel2 = _max_rel_err(out2, ref2)
    assert rel2 < 5e-2, f"case2 mismatch vs reference, max rel err = {rel2}"

    print("KERNEL_OK")
</pallas_src>

<mosaic_0001>
module attributes {stable_mosaic.version = 11 : i64} {
  func.func @_fusion_kernel(%arg0: i32, %arg1: i32, %arg2: memref<32x256xf32, #tpu.memory_space<vmem>>, %arg3: memref<256x128xbf16, #tpu.memory_space<vmem>>, %arg4: memref<1x128xf32, #tpu.memory_space<vmem>>, %arg5: memref<128x128xbf16, #tpu.memory_space<vmem>>, %arg6: memref<1x128xf32, #tpu.memory_space<vmem>>, %arg7: memref<1x128xf32, #tpu.memory_space<vmem>>, %arg8: memref<1x128xf32, #tpu.memory_space<vmem>>, %arg9: memref<32x128xf32, #tpu.memory_space<vmem>>) attributes {dimension_semantics = [#tpu.dimension_semantics<parallel>, #tpu.dimension_semantics<arbitrary>], iteration_bounds = array<i64: 3, 1>, scalar_prefetch = 0 : i64, scratch_operands = 0 : i64, tpu.core_type = #tpu.core_type<tc>, window_params = [{transform_indices = @transform_0, window_bounds = array<i64: 32, 256>}, {pipeline_mode = #tpu.pipeline_mode<synchronous>, transform_indices = @transform_1, window_bounds = array<i64: 256, 128>}, {pipeline_mode = #tpu.pipeline_mode<synchronous>, transform_indices = @transform_2, window_bounds = array<i64: 1, 128>}, {pipeline_mode = #tpu.pipeline_mode<synchronous>, transform_indices = @transform_3, window_bounds = array<i64: 128, 128>}, {pipeline_mode = #tpu.pipeline_mode<synchronous>, transform_indices = @transform_4, window_bounds = array<i64: 1, 128>}, {pipeline_mode = #tpu.pipeline_mode<synchronous>, transform_indices = @transform_5, window_bounds = array<i64: 1, 128>}, {pipeline_mode = #tpu.pipeline_mode<synchronous>, transform_indices = @transform_6, window_bounds = array<i64: 1, 128>}, {transform_indices = @transform_7, window_bounds = array<i64: 32, 128>}]} {
    %c0 = arith.constant 0 : index
    %c0_0 = arith.constant 0 : index
    %0 = vector.load %arg2[%c0, %c0_0] : memref<32x256xf32, #tpu.memory_space<vmem>>, vector<32x256xf32>
    %1 = arith.truncf %0 : vector<32x256xf32> to vector<32x256xbf16>
    %c0_1 = arith.constant 0 : index
    %c0_2 = arith.constant 0 : index
    %2 = vector.load %arg3[%c0_1, %c0_2] : memref<256x128xbf16, #tpu.memory_space<vmem>>, vector<256x128xbf16>
    %cst = arith.constant dense<0.000000e+00> : vector<32x128xf32>
    %3 = tpu.matmul %1, %2, %cst {dimension_numbers = #tpu.dot_dimension_numbers<[1], [0], [0], [1], [0, 0, 1, 1], [], []>} : vector<32x256xbf16>, vector<256x128xbf16>, vector<32x128xf32> -> vector<32x128xf32>
    %c0_3 = arith.constant 0 : index
    %c0_4 = arith.constant 0 : index
    %4 = vector.load %arg4[%c0_3, %c0_4] : memref<1x128xf32, #tpu.memory_space<vmem>>, vector<1x128xf32>
    %5 = vector.broadcast %4 : vector<1x128xf32> to vector<32x128xf32>
    %6 = arith.addf %3, %5 : vector<32x128xf32>
    %cst_5 = arith.constant 0.000000e+00 : f32
    %7 = vector.broadcast %cst_5 : f32 to vector<32x128xf32>
    %8 = arith.maximumf %6, %7 : vector<32x128xf32>
    %9 = arith.truncf %8 : vector<32x128xf32> to vector<32x128xbf16>
    %c0_6 = arith.constant 0 : index
    %c0_7 = arith.constant 0 : index
    %10 = vector.load %arg5[%c0_6, %c0_7] : memref<128x128xbf16, #tpu.memory_space<vmem>>, vector<128x128xbf16>
    %cst_8 = arith.constant dense<0.000000e+00> : vector<32x128xf32>
    %11 = tpu.matmul %9, %10, %cst_8 {dimension_numbers = #tpu.dot_dimension_numbers<[1], [0], [0], [1], [0, 0, 1, 1], [], []>} : vector<32x128xbf16>, vector<128x128xbf16>, vector<32x128xf32> -> vector<32x128xf32>
    %c0_9 = arith.constant 0 : index
    %c0_10 = arith.constant 0 : index
    %12 = vector.load %arg6[%c0_9, %c0_10] : memref<1x128xf32, #tpu.memory_space<vmem>>, vector<1x128xf32>
    %13 = vector.broadcast %12 : vector<1x128xf32> to vector<32x128xf32>
    %14 = arith.addf %11, %13 : vector<32x128xf32>
    %15 = tpu.iota {dimensions = array<i32: 1>} : vector<32x128xi32>
    %c64_i32 = arith.constant 64 : i32
    %16 = vector.broadcast %c64_i32 : i32 to vector<32x128xi32>
    %17 = arith.cmpi slt, %15, %16 : vector<32x128xi32>
    %18 = arith.extui %17 : vector<32x128xi1> to vector<32x128xi32>
    %19 = arith.sitofp %18 : vector<32x128xi32> to vector<32x128xf32>
    %cst_11 = arith.constant dense<0.000000e+00> : vector<32xf32>
    %20 = vector.multi_reduction <add>, %14, %cst_11 [1] : vector<32x128xf32> to vector<32xf32>
    %21 = vector.shape_cast %20 : vector<32xf32> to vector<32x1xf32>
    %cst_12 = arith.constant 1.562500e-02 : f32
    %22 = vector.broadcast %cst_12 : f32 to vector<32x1xf32>
    %23 = arith.mulf %21, %22 : vector<32x1xf32>
    %24 = vector.broadcast %23 : vector<32x1xf32> to vector<32x128xf32>
    %25 = arith.subf %14, %24 : vector<32x128xf32>
    %26 = arith.mulf %25, %19 : vector<32x128xf32>
    %27 = arith.mulf %26, %26 : vector<32x128xf32>
    %cst_13 = arith.constant dense<0.000000e+00> : vector<32xf32>
    %28 = vector.multi_reduction <add>, %27, %cst_13 [1] : vector<32x128xf32> to vector<32xf32>
    %29 = vector.shape_cast %28 : vector<32xf32> to vector<32x1xf32>
    %cst_14 = arith.constant 1.562500e-02 : f32
    %30 = vector.broadcast %cst_14 : f32 to vector<32x1xf32>
    %31 = arith.mulf %29, %30 : vector<32x1xf32>
    %cst_15 = arith.constant 9.99999974E-6 : f32
    %32 = vector.broadcast %cst_15 : f32 to vector<32x1xf32>
    %33 = arith.addf %31, %32 : vector<32x1xf32>
    %34 = math.rsqrt %33 : vector<32x1xf32>
    %35 = vector.broadcast %34 : vector<32x1xf32> to vector<32x128xf32>
    %36 = arith.mulf %26, %35 : vector<32x128xf32>
    %c0_16 = arith.constant 0 : index
    %c0_17 = arith.constant 0 : index
    %37 = vector.load %arg7[%c0_16, %c0_17] : memref<1x128xf32, #tpu.memory_space<vmem>>, vector<1x128xf32>
    %38 = vector.broadcast %37 : vector<1x128xf32> to vector<32x128xf32>
    %39 = arith.mulf %36, %38 : vector<32x128xf32>
    %c0_18 = arith.constant 0 : index
    %c0_19 = arith.constant 0 : index
    %40 = vector.load %arg8[%c0_18, %c0_19] : memref<1x128xf32, #tpu.memory_space<vmem>>, vector<1x128xf32>
    %41 = vector.broadcast %40 : vector<1x128xf32> to vector<32x128xf32>
    %42 = arith.addf %39, %41 : vector<32x128xf32>
    %cst_20 = arith.constant 0.000000e+00 : f32
    %43 = vector.broadcast %cst_20 : f32 to vector<32x128xf32>
    %44 = arith.maximumf %42, %43 : vector<32x128xf32>
    %c0_21 = arith.constant 0 : index
    %c0_22 = arith.constant 0 : index
    %45 = vector.load %arg9[%c0_21, %c0_22] : memref<32x128xf32, #tpu.memory_space<vmem>>, vector<32x128xf32>
    tpu.vector_store %arg9[%c0_21, %c0_22], %44 {strides = array<i32>} : memref<32x128xf32, #tpu.memory_space<vmem>>, vector<32x128xf32>,
    return
  }
  func.func @transform_0(%arg0: i32, %arg1: i32) -> (i32, i32) {
    %c0_i32 = arith.constant 0 : i32
    %c0_i32_0 = arith.constant 0 : i32
    return %arg0, %c0_i32 : i32, i32
  }
  func.func @transform_1(%arg0: i32, %arg1: i32) -> (i32, i32) {
    %c0_i32 = arith.constant 0 : i32
    %c0_i32_0 = arith.constant 0 : i32
    return %c0_i32, %arg1 : i32, i32
  }
  func.func @transform_2(%arg0: i32, %arg1: i32) -> (i32, i32) {
    %c0_i32 = arith.constant 0 : i32
    %c0_i32_0 = arith.constant 0 : i32
    return %c0_i32, %arg1 : i32, i32
  }
  func.func @transform_3(%arg0: i32, %arg1: i32) -> (i32, i32) {
    %c0_i32 = arith.constant 0 : i32
    %c0_i32_0 = arith.constant 0 : i32
    return %arg1, %c0_i32 : i32, i32
  }
  func.func @transform_4(%arg0: i32, %arg1: i32) -> (i32, i32) {
    %c0_i32 = arith.constant 0 : i32
    %c0_i32_0 = arith.constant 0 : i32
    %c0_i32_1 = arith.constant 0 : i32
    return %c0_i32, %c0_i32_0 : i32, i32
  }
  func.func @transform_5(%arg0: i32, %arg1: i32) -> (i32, i32) {
    %c0_i32 = arith.constant 0 : i32
    %c0_i32_0 = arith.constant 0 : i32
    %c0_i32_1 = arith.constant 0 : i32
    return %c0_i32, %c0_i32_0 : i32, i32
  }
  func.func @transform_6(%arg0: i32, %arg1: i32) -> (i32, i32) {
    %c0_i32 = arith.constant 0 : i32
    %c0_i32_0 = arith.constant 0 : i32
    %c0_i32_1 = arith.constant 0 : i32
    return %c0_i32, %c0_i32_0 : i32, i32
  }
  func.func @transform_7(%arg0: i32, %arg1: i32) -> (i32, i32) {
    %c0_i32 = arith.constant 0 : i32
    %c0_i32_0 = arith.constant 0 : i32
    return %arg0, %c0_i32 : i32, i32
  }
}

</mosaic_0001>

<llo_original>
// kernel: tpu_custom_call.1
$region0: #{tpu_custom_call.1}
  #allocation0 [shape = 'u32[]', space=smem, size = 0x4, offset = 0x4, fixed_abs, tag = 'smem constant byte address 0x4 - core index']
  #allocation1 [shape = 'u32[72,128]{1,0:T(1,128)}', space=vmem, size = 0x9000, scoped, tag = 'internal scratch']
  %s0 = inlined_call_operand.hbm [shape: f32[96,256], index: 0, kind: input, shape index: {}]
  %s1 = inlined_call_operand.hbm [shape: bf16[256,128], index: 1, kind: input, shape index: {}]
  %s2 = inlined_call_operand.vmem [shape: f32[1,128], index: 2, kind: input, shape index: {}]
  %s3 = inlined_call_operand.hbm [shape: bf16[128,128], index: 3, kind: input, shape index: {}]
  %s4 = inlined_call_operand.vmem [shape: f32[1,128], index: 4, kind: input, shape index: {}]
  %s5 = inlined_call_operand.vmem [shape: f32[1,128], index: 5, kind: input, shape index: {}]
  %s6 = inlined_call_operand.vmem [shape: f32[1,128], index: 6, kind: input, shape index: {}]
  %s7 = inlined_call_operand.hbm [shape: f32[96,128], index: 7, kind: output, shape index: {}]
  %s8 = sld [smem:[#allocation0]]
  $region73: #{tpu_custom_call.1} parent=0
    _
  %s10 = ssub.s32 1, %s8
  %s11 = scalar_select 0, %s10, %s8
  $region1: #{tpu_custom_call.1} parent=0
    #allocation2 [shape = 'u8[65536]{0}', space=vmem, size = 0x10000, scoped, tag = 'input window, operand 0']
    #allocation3 [shape = 's32[2]{0}', space=sflag, size = 0x8, scoped, tag = 'scoped memory for tpu_custom_call.1']
    #allocation4 [shape = 's32[2]{0}', space=sflag, size = 0x8, scoped, tag = 'scoped memory for tpu_custom_call.1']
    #allocation5 [shape = 'u8[65536]{0}', space=vmem, size = 0x10000, scoped, tag = 'input window, operand 1, single buffered']
    #allocation6 [shape = 's32[1]{0}', space=sflag, size = 0x4, scoped, tag = 'scoped memory for tpu_custom_call.1']
    #allocation7 [shape = 'u8[32768]{0}', space=vmem, size = 0x8000, scoped, tag = 'input window, operand 3, single buffered']
    #allocation8 [shape = 'u8[32768]{0}', space=vmem, size = 0x8000, scoped, tag = 'output window, operand 0']
    %12 = vsyncpa [#allocation3], 0
    %s13 = scalar_lea.sflag [#allocation3], 1
    %14 = vsyncpa %s13, 0
    %15 = vsyncpa [#allocation6], 0
    %16 = vsyncpa [#allocation4], 0
    %s17 = scalar_lea.sflag [#allocation4], 1
    %18 = vsyncpa %s17, 0
    loop: start=0, step=1, limit=5
    $region2: #{tpu_custom_call.1} parent=1 // loop_pre_header
      _
    $region3: #{tpu_custom_call.1} parent=1 // loop_header
      %s20 = sphi 0, %s24
      %p21 = scmp.ge.s32.totalorder %s20, 5
      %s27 = sphi 0, %s39
      %s28 = sphi 0, %s35
      %s29 = sphi 0, %s27
      %s30 = sphi 0, %s28
      %s31 = sphi 0, %s29
      %s32 = sphi 0, %s30
      %s42 = sphi 0, %s44
      %s45 = sphi 0, %s42
      %s46 = sphi 0, %s45
      %s62 = sphi 0, %s46
      %s68 = sphi 0, %s70
      %s71 = sphi 0, %s68
      %s72 = sphi 0, %s71
      %s88 = sphi 0, %s72
      %s94 = sphi 0, %s96
      %s97 = sphi 0, %s94
      %s98 = sphi 0, %s97
      %s114 = sphi 0, %s98
      %s120 = sphi 0, %s122
      %s123 = sphi 0, %s120
      %s124 = sphi 0, %s123
      %s140 = sphi 0, %s124
      %s144 = sphi 0, %s144
      %s146 = sphi 0, %s144
      %s147 = sphi 0, %s146
      %s161 = sphi 0, %s147
      %s165 = sphi 0, %s165
      %s167 = sphi 0, %s165
      %s168 = sphi 0, %s167
      %s182 = sphi 0, %s168
      %s186 = sphi 0, %s186
      %s188 = sphi 0, %s186
      %s189 = sphi 0, %s188
      %s203 = sphi 0, %s189
      %s209 = sphi 0, %s211
      %s212 = sphi 0, %s209
      %s213 = sphi 0, %s212
      %s229 = sphi 0, %s213
    $region4: #{tpu_custom_call.1} parent=1 // loop_header_branch
      %23 = sbr.rel (%p21) target = $region8
    $region5: #{tpu_custom_call.1} parent=1 // loop_body
      %s25 = ssub.s32 %s20, 1
      %s26 = ssub.s32 %s20, 2
      %s33 = sadd.s32 1, %s28
      %p34 = scmp.ge.s32.totalorder %s33, 1
      %s35 = scalar_select %p34, 0, %s33
      %s36 = sadd.s32 1, %s27
      %s37 = scalar_select %p34, %s36, %s27
      %p38 = scmp.ge.s32.totalorder %s37, 3
      %s39 = scalar_select %p38, 0, %s37
      %s40 = ssub.s32 %s27, %s39
      %p41 = scmp.eq.s32.totalorder %s40, 0
      %s43 = sadd.s32 %s42, 1
      %s44 = scalar_select %p41, %s42, %s43
      %p47 = pneg %p41
      %p48 = scmp.eq.s32.totalorder %s20, 2
      %p49 = por %p47, %p48
      %p50 = scmp.ne.s32.totalorder %s42, %s45
      %p51 = scmp.eq.s32.totalorder %s20, 0
      %p52 = por %p50, %p51
      %p53 = scmp.ne.s32.totalorder %s42, %s45
      %p54 = scmp.eq.s32.totalorder %s25, 2
      %p55 = por %p53, %p54
      %p56 = scmp.ne.s32.totalorder %s45, %s46
      %p57 = scmp.eq.s32.totalorder %s25, 0
      %p58 = por %p56, %p57
      %p59 = scmp.ne.s32.totalorder %s45, %s46
      %p60 = scmp.eq.s32.totalorder %s26, 2
      %p61 = por %p59, %p60
      %p63 = scmp.ne.s32.totalorder %s46, %s62
      %p64 = scmp.eq.s32.totalorder %s26, 0
      %p65 = por %p63, %p64
      %s66 = ssub.s32 %s28, %s35
      %p67 = scmp.eq.s32.totalorder %s66, 0
      %s69 = sadd.s32 %s68, 1
      %s70 = scalar_select %p67, %s68, %s69
      %p73 = pneg %p67
      %p74 = scmp.eq.s32.totalorder %s20, 2
      %p75 = por %p73, %p74
      %p76 = scmp.ne.s32.totalorder %s68, %s71
      %p77 = scmp.eq.s32.totalorder %s20, 0
      %p78 = por %p76, %p77
      %p79 = scmp.ne.s32.totalorder %s68, %s71
      %p80 = scmp.eq.s32.totalorder %s25, 2
      %p81 = por %p79, %p80
      %p82 = scmp.ne.s32.totalorder %s71, %s72
      %p83 = scmp.eq.s32.totalorder %s25, 0
      %p84 = por %p82, %p83
      %p85 = scmp.ne.s32.totalorder %s71, %s72
      %p86 = scmp.eq.s32.totalorder %s26, 2
      %p87 = por %p85, %p86
      %p89 = scmp.ne.s32.totalorder %s72, %s88
      %p90 = scmp.eq.s32.totalorder %s26, 0
      %p91 = por %p89, %p90
      %s92 = ssub.s32 %s28, %s35
      %p93 = scmp.eq.s32.totalorder %s92, 0
      %s95 = sadd.s32 %s94, 1
      %s96 = scalar_select %p93, %s94, %s95
      %p99 = pneg %p93
      %p100 = scmp.eq.s32.totalorder %s20, 2
      %p101 = por %p99, %p100
      %p102 = scmp.ne.s32.totalorder %s94, %s97
      %p103 = scmp.eq.s32.totalorder %s20, 0
      %p104 = por %p102, %p103
      %p105 = scmp.ne.s32.totalorder %s94, %s97
      %p106 = scmp.eq.s32.totalorder %s25, 2
      %p107 = por %p105, %p106
      %p108 = scmp.ne.s32.totalorder %s97, %s98
      %p109 = scmp.eq.s32.totalorder %s25, 0
      %p110 = por %p108, %p109
      %p111 = scmp.ne.s32.totalorder %s97, %s98
      %p112 = scmp.eq.s32.totalorder %s26, 2
      %p113 = por %p111, %p112
      %p115 = scmp.ne.s32.totalorder %s98, %s114
      %p116 = scmp.eq.s32.totalorder %s26, 0
      %p117 = por %p115, %p116
      %s118 = ssub.s32 %s28, %s35
      %p119 = scmp.eq.s32.totalorder %s118, 0
      %s121 = sadd.s32 %s120, 1
      %s122 = scalar_select %p119, %s120, %s121
      %p125 = pneg %p119
      %p126 = scmp.eq.s32.totalorder %s20, 2
      %p127 = por %p125, %p126
      %p128 = scmp.ne.s32.totalorder %s120, %s123
      %p129 = scmp.eq.s32.totalorder %s20, 0
      %p130 = por %p128, %p129
      %p131 = scmp.ne.s32.totalorder %s120, %s123
      %p132 = scmp.eq.s32.totalorder %s25, 2
      %p133 = por %p131, %p132
      %p134 = scmp.ne.s32.totalorder %s123, %s124
      %p135 = scmp.eq.s32.totalorder %s25, 0
      %p136 = por %p134, %p135
      %p137 = scmp.ne.s32.totalorder %s123, %s124
      %p138 = scmp.eq.s32.totalorder %s26, 2
      %p139 = por %p137, %p138
      %p141 = scmp.ne.s32.totalorder %s124, %s140
      %p142 = scmp.eq.s32.totalorder %s26, 0
      %p143 = por %p141, %p142
      %s145 = sadd.s32 %s144, 1
      %p148 = scmp.eq.s32.totalorder %s20, 2
      %p149 = scmp.ne.s32.totalorder %s144, %s146
      %p150 = scmp.eq.s32.totalorder %s20, 0
      %p151 = por %p149, %p150
      %p152 = scmp.ne.s32.totalorder %s144, %s146
      %p153 = scmp.eq.s32.totalorder %s25, 2
      %p154 = por %p152, %p153
      %p155 = scmp.ne.s32.totalorder %s146, %s147
      %p156 = scmp.eq.s32.totalorder %s25, 0
      %p157 = por %p155, %p156
      %p158 = scmp.ne.s32.totalorder %s146, %s147
      %p159 = scmp.eq.s32.totalorder %s26, 2
      %p160 = por %p158, %p159
      %p162 = scmp.ne.s32.totalorder %s147, %s161
      %p163 = scmp.eq.s32.totalorder %s26, 0
      %p164 = por %p162, %p163
      %s166 = sadd.s32 %s165, 1
      %p169 = scmp.eq.s32.totalorder %s20, 2
      %p170 = scmp.ne.s32.totalorder %s165, %s167
      %p171 = scmp.eq.s32.totalorder %s20, 0
      %p172 = por %p170, %p171
      %p173 = scmp.ne.s32.totalorder %s165, %s167
      %p174 = scmp.eq.s32.totalorder %s25, 2
      %p175 = por %p173, %p174
      %p176 = scmp.ne.s32.totalorder %s167, %s168
      %p177 = scmp.eq.s32.totalorder %s25, 0
      %p178 = por %p176, %p177
      %p179 = scmp.ne.s32.totalorder %s167, %s168
      %p180 = scmp.eq.s32.totalorder %s26, 2
      %p181 = por %p179, %p180
      %p183 = scmp.ne.s32.totalorder %s168, %s182
      %p184 = scmp.eq.s32.totalorder %s26, 0
      %p185 = por %p183, %p184
      %s187 = sadd.s32 %s186, 1
      %p190 = scmp.eq.s32.totalorder %s20, 2
      %p191 = scmp.ne.s32.totalorder %s186, %s188
      %p192 = scmp.eq.s32.totalorder %s20, 0
      %p193 = por %p191, %p192
      %p194 = scmp.ne.s32.totalorder %s186, %s188
      %p195 = scmp.eq.s32.totalorder %s25, 2
      %p196 = por %p194, %p195
      %p197 = scmp.ne.s32.totalorder %s188, %s189
      %p198 = scmp.eq.s32.totalorder %s25, 0
      %p199 = por %p197, %p198
      %p200 = scmp.ne.s32.totalorder %s188, %s189
      %p201 = scmp.eq.s32.totalorder %s26, 2
      %p202 = por %p200, %p201
      %p204 = scmp.ne.s32.totalorder %s189, %s203
      %p205 = scmp.eq.s32.totalorder %s26, 0
      %p206 = por %p204, %p205
      %s207 = ssub.s32 %s27, %s39
      %p208 = scmp.eq.s32.totalorder %s207, 0
      %s210 = sadd.s32 %s209, 1
      %s211 = scalar_select %p208, %s209, %s210
      %p214 = pneg %p208
      %p215 = scmp.eq.s32.totalorder %s20, 2
      %p216 = por %p214, %p215
      %p217 = scmp.ne.s32.totalorder %s209, %s212
      %p218 = scmp.eq.s32.totalorder %s20, 0
      %p219 = por %p217, %p218
      %p220 = scmp.ne.s32.totalorder %s209, %s212
      %p221 = scmp.eq.s32.totalorder %s25, 2
      %p222 = por %p220, %p221
      %p223 = scmp.ne.s32.totalorder %s212, %s213
      %p224 = scmp.eq.s32.totalorder %s25, 0
      %p225 = por %p223, %p224
      %p226 = scmp.ne.s32.totalorder %s212, %s213
      %p227 = scmp.eq.s32.totalorder %s26, 2
      %p228 = por %p226, %p227
      %p230 = scmp.ne.s32.totalorder %s213, %s229
      %p231 = scmp.eq.s32.totalorder %s26, 0
      %p232 = por %p230, %p231
      %p233 = scmp.le.s32.totalorder 1, %s20
      %p234 = scmp.lt.s32.totalorder %s20, 4
      %p235 = pnand %p233, %p234
      %p236 = pneg %p235
      // Predicated region
      $region9: #{tpu_custom_call.1} parent=5 // pred_check
        _
      $region10: #{tpu_custom_call.1} parent=5 // pred_check_branch
        %238 = sbr.rel (%p235) target = $region12
      $region11: #{tpu_custom_call.1} parent=5 // pred_region
        %s239 = ssub.s32 %s20, 1
        // Predicated region
        $region13: #{tpu_custom_call.1} parent=11 // pred_check
          %p240 = pneg %p84
        $region14: #{tpu_custom_call.1} parent=11 // pred_check_branch
          %242 = sbr.rel (%p240) target = $region16
        $region15: #{tpu_custom_call.1} parent=11 // pred_region
          %244 = vsyncadd [#allocation6], 0
          %s245 = smul.addr %s30, 4
          %s246 = scalar_lea.hbm %s1, %s245
          %s247 = sshll.u32 %s246, 4
          %s248 = int_to_ptr.hbm [resolvable:$true] %s247
          %s249 = sshll.u32 [#allocation5], 4
          %s250 = int_to_ptr.vmem [resolvable:$true] %s249
          %255 = dma.hbm_to_vmem [thread:$0]  %s248, 2048, %s250, [#allocation6], 64, 64, 4
        $region16: #{tpu_custom_call.1} parent=11 // pred_fallthru
          _
        // Predicated region
        $region17: #{tpu_custom_call.1} parent=11 // pred_check
          %p256 = pneg %p110
        $region18: #{tpu_custom_call.1} parent=11 // pred_check_branch
          %258 = sbr.rel (%p256) target = $region20
        $region19: #{tpu_custom_call.1} parent=11 // pred_region
          %p259 = scmp.lt.s32.totalorder %s30, 0
          %s260 = scalar_select %p259, %s30, 0
          %s261 = scalar_lea.vmem %s2, %s260
        $region20: #{tpu_custom_call.1} parent=11 // pred_fallthru
          _
        // Predicated region
        $region21: #{tpu_custom_call.1} parent=11 // pred_check
          %p262 = pneg %p136
        $region22: #{tpu_custom_call.1} parent=11 // pred_check_branch
          %264 = sbr.rel (%p262) target = $region24
        $region23: #{tpu_custom_call.1} parent=11 // pred_region
          %s265 = smul.u32 16, %s30
          %267 = vsyncadd [#allocation6], 0
          %s268 = smul.addr %s265, 4
          %s269 = scalar_lea.hbm %s3, %s268
          %s270 = sshll.u32 %s269, 4
          %s271 = int_to_ptr.hbm [resolvable:$true] %s270
          %s272 = sshll.u32 [#allocation7], 4
          %s273 = int_to_ptr.vmem [resolvable:$true] %s272
          %278 = dma.hbm_to_vmem [thread:$0]  %s271, 1024, %s273, [#allocation6], 64, 64, 4
        $region24: #{tpu_custom_call.1} parent=11 // pred_fallthru
          _
        // Predicated region
        $region25: #{tpu_custom_call.1} parent=11 // pred_check
          %p279 = pneg %p157
        $region26: #{tpu_custom_call.1} parent=11 // pred_check_branch
          %281 = sbr.rel (%p279) target = $region28
        $region27: #{tpu_custom_call.1} parent=11 // pred_region
          _
        $region28: #{tpu_custom_call.1} parent=11 // pred_fallthru
          _
        // Predicated region
        $region29: #{tpu_custom_call.1} parent=11 // pred_check
          %p282 = pneg %p178
        $region30: #{tpu_custom_call.1} parent=11 // pred_check_branch
          %284 = sbr.rel (%p282) target = $region32
        $region31: #{tpu_custom_call.1} parent=11 // pred_region
          _
        $region32: #{tpu_custom_call.1} parent=11 // pred_fallthru
          _
        // Predicated region
        $region33: #{tpu_custom_call.1} parent=11 // pred_check
          %p285 = pneg %p199
        $region34: #{tpu_custom_call.1} parent=11 // pred_check_branch
          %287 = sbr.rel (%p285) target = $region36
        $region35: #{tpu_custom_call.1} parent=11 // pred_region
          _
        $region36: #{tpu_custom_call.1} parent=11 // pred_fallthru
          _
      $region12: #{tpu_custom_call.1} parent=5 // pred_fallthru
        _
      %p288 = scmp.lt.s32.totalorder %s20, 3
      // Predicated region
      $region37: #{tpu_custom_call.1} parent=5 // pred_check
        %p289 = pneg %p288
      $region38: #{tpu_custom_call.1} parent=5 // pred_check_branch
        %291 = sbr.rel (%p289) target = $region40
      $region39: #{tpu_custom_call.1} parent=5 // pred_region
        // Predicated region
        $region41: #{tpu_custom_call.1} parent=39 // pred_check
          %p292 = pneg %p52
        $region42: #{tpu_custom_call.1} parent=39 // pred_check_branch
          %294 = sbr.rel (%p292) target = $region44
        $region43: #{tpu_custom_call.1} parent=39 // pred_region
          %s295 = sand.u32 %s42, 1
          %s296 = scalar_lea.sflag [#allocation3], %s295
          %s297 = sand.u32 %s42, 1
          %s298 = smul.addr %s297, 64
          %s299 = scalar_lea.vmem [#allocation2], %s298
          %s300 = smul.u32 4, %s27
          %302 = vsyncadd %s296, 0
          %s303 = smul.addr %s300, 2
          %s304 = smul.addr %s303, 8
          %s305 = scalar_lea.hbm %s0, %s304
          %s306 = sshll.u32 %s305, 4
          %s307 = int_to_ptr.hbm [resolvable:$true] %s306
          %s308 = sshll.u32 %s299, 4
          %s309 = int_to_ptr.vmem [resolvable:$true] %s308
          %314 = dma.hbm_to_vmem [thread:$0]  %s307, 1024, %s309, %s296, 256, 256, 16
        $region44: #{tpu_custom_call.1} parent=39 // pred_fallthru
          _
      $region40: #{tpu_custom_call.1} parent=5 // pred_fallthru
        _
      %p315 = scmp.le.s32.totalorder 1, %s20
      %p316 = scmp.lt.s32.totalorder %s20, 4
      %p317 = pnand %p315, %p316
      %p318 = pneg %p317
      // Predicated region
      $region45: #{tpu_custom_call.1} parent=5 // pred_check
        _
      $region46: #{tpu_custom_call.1} parent=5 // pred_check_branch
        %320 = sbr.rel (%p317) target = $region48
      $region47: #{tpu_custom_call.1} parent=5 // pred_region
        %s321 = ssub.s32 %s20, 1
        %s322 = sand.u32 %s45, 1
        %s323 = scalar_lea.sflag [#allocation3], %s322
        %s324 = sand.u32 %s45, 1
        %s325 = smul.addr %s324, 64
        %s326 = scalar_lea.vmem [#allocation2], %s325
        // Predicated region
        $region49: #{tpu_custom_call.1} parent=47 // pred_check
          %p327 = pneg %p58
        $region50: #{tpu_custom_call.1} parent=47 // pred_check_branch
          %329 = sbr.rel (%p327) target = $region52
        $region51: #{tpu_custom_call.1} parent=47 // pred_region
          %331 = dma.done %s323, 1024
        $region52: #{tpu_custom_call.1} parent=47 // pred_fallthru
          _
        // Predicated region
        $region53: #{tpu_custom_call.1} parent=47 // pred_check
          %p332 = pneg %p84
        $region54: #{tpu_custom_call.1} parent=47 // pred_check_branch
          %334 = sbr.rel (%p332) target = $region56
        $region55: #{tpu_custom_call.1} parent=47 // pred_region
          %336 = dma.done [#allocation6], 2048
        $region56: #{tpu_custom_call.1} parent=47 // pred_fallthru
          _
        // Predicated region
        $region57: #{tpu_custom_call.1} parent=47 // pred_check
          %p337 = pneg %p136
        $region58: #{tpu_custom_call.1} parent=47 // pred_check_branch
          %339 = sbr.rel (%p337) target = $region60
        $region59: #{tpu_custom_call.1} parent=47 // pred_region
          %341 = dma.done [#allocation6], 1024
        $region60: #{tpu_custom_call.1} parent=47 // pred_fallthru
          _
        %s342 = sand.u32 %s45, 1
        %s343 = scalar_lea.sflag [#allocation3], %s342
        %s344 = sand.u32 %s45, 1
        %s345 = smul.addr %s344, 64
        %s346 = scalar_lea.vmem [#allocation2], %s345
        %p347 = pneg %p58
        %p348 = pneg %p55
        %p349 = pneg %p84
        %p350 = pneg %p81
        %p351 = scmp.lt.s32.totalorder %s30, 0
        %s352 = scalar_select %p351, %s30, 0
        %s353 = scalar_lea.vmem %s2, %s352
        %p354 = pneg %p110
        %p355 = pneg %p107
        %p356 = pneg %p136
        %p357 = pneg %p133
        %p358 = pneg %p157
        %p359 = pneg %p154
        %p360 = pneg %p178
        %p361 = pneg %p175
        %p362 = pneg %p199
        %p363 = pneg %p196
        %p364 = pneg %p225
        %p365 = pneg %p222
        %s366 = sand.u32 %s212, 1
        %s367 = scalar_lea.sflag [#allocation4], %s366
        %s368 = sand.u32 %s212, 1
        %s369 = smul.addr %s368, 32
        %s370 = scalar_lea.vmem [#allocation8], %s369
        %s371 = smul.u32 4, %s29
        %p372 = scmp.lt.s32.totalorder %s30, 0
        %s373 = scalar_select %p372, %s30, 0
        %s374 = scalar_lea.vmem %s2, %s373
        %s375 = smul.u32 16, %s30
        %s376 = smul.u32 4, %s29
        %v377 = vld [vmem:[%s326] sm:$0xff]
        %v378 = vld [vmem:[%s326 + $0x8] sm:$0xff]
        %v379 = vld [vmem:[%s326 + $0x10] sm:$0xff]
        %v380 = vld [vmem:[%s326 + $0x18] sm:$0xff]
        %v381 = vld [vmem:[%s326 + $0x20] sm:$0xff]
        %v382 = vld [vmem:[%s326 + $0x28] sm:$0xff]
        %v383 = vld [vmem:[%s326 + $0x30] sm:$0xff]
        %v384 = vld [vmem:[%s326 + $0x38] sm:$0xff]
        %v385 = vpack.c.bf16 %v379, %v377
        %v386 = vpack.c.bf16 %v380, %v378
        %v387 = vpack.c.bf16 %v383, %v381
        %v388 = vpack.c.bf16 %v384, %v382
        %v389 = vld [vmem:[#allocation5] sm:$0xf]
        %v390 = vld [vmem:[#allocation5 + $0x4] sm:$0xf]
        %v391 = vld [vmem:[#allocation5 + $0x8] sm:$0xf]
        %v392 = vld [vmem:[#allocation5 + $0xc] sm:$0xf]
        %v393 = vld [vmem:[#allocation5 + $0x10] sm:$0xf]
        %v394 = vld [vmem:[#allocation5 + $0x14] sm:$0xf]
        %v395 = vld [vmem:[#allocation5 + $0x18] sm:$0xf]
        %v396 = vld [vmem:[#allocation5 + $0x1c] sm:$0xf]
        %v397 = vld [vmem:[#allocation5 + $0x20] sm:$0xf]
        %v398 = vld [vmem:[#allocation5 + $0x24] sm:$0xf]
        %v399 = vld [vmem:[#allocation5 + $0x28] sm:$0xf]
        %v400 = vld [vmem:[#allocation5 + $0x2c] sm:$0xf]
        %v401 = vld [vmem:[#allocation5 + $0x30] sm:$0xf]
        %v402 = vld [vmem:[#allocation5 + $0x34] sm:$0xf]
        %v403 = vld [vmem:[#allocation5 + $0x38] sm:$0xf]
        %v404 = vld [vmem:[#allocation5 + $0x3c] sm:$0xf]
        %v405 = vld [vmem:[#allocation5 + $0x40] sm:$0xf]
        %v406 = vld [vmem:[#allocation5 + $0x44] sm:$0xf]
        %v407 = vld [vmem:[#allocation5 + $0x48] sm:$0xf]
        %v408 = vld [vmem:[#allocation5 + $0x4c] sm:$0xf]
        %v409 = vld [vmem:[#allocation5 + $0x50] sm:$0xf]
        %v410 = vld [vmem:[#allocation5 + $0x54] sm:$0xf]
        %v411 = vld [vmem:[#allocation5 + $0x58] sm:$0xf]
        %v412 = vld [vmem:[#allocation5 + $0x5c] sm:$0xf]
        %v413 = vld [vmem:[#allocation5 + $0x60] sm:$0xf]
        %v414 = vld [vmem:[#allocation5 + $0x64] sm:$0xf]
        %v415 = vld [vmem:[#allocation5 + $0x68] sm:$0xf]
        %v416 = vld [vmem:[#allocation5 + $0x6c] sm:$0xf]
        %v417 = vld [vmem:[#allocation5 + $0x70] sm:$0xf]
        %v418 = vld [vmem:[#allocation5 + $0x74] sm:$0xf]
        %v419 = vld [vmem:[#allocation5 + $0x78] sm:$0xf]
        %v420 = vld [vmem:[#allocation5 + $0x7c] sm:$0xf]
        %v421 = vld [vmem:[%s374] sm:$0x1]
        %v423 = vperm.slane %v421, 0
        %v457 = vunpack.c.l.b16 %v389
        %v458 = vunpack.c.l.b16 %v390
        %v459 = vunpack.c.l.b16 %v391
        %v460 = vunpack.c.l.b16 %v392
        %v461 = vunpack.c.l.b16 %v393
        %v462 = vunpack.c.l.b16 %v394
        %v463 = vunpack.c.l.b16 %v395
        %v464 = vunpack.c.l.b16 %v396
        %v465 = vunpack.c.l.b16 %v397
        %v466 = vunpack.c.l.b16 %v398
        %v467 = vunpack.c.l.b16 %v399
        %v468 = vunpack.c.l.b16 %v400
        %v469 = vunpack.c.l.b16 %v401
        %v470 = vunpack.c.l.b16 %v402
        %v471 = vunpack.c.l.b16 %v403
        %v472 = vunpack.c.l.b16 %v404
        %v473 = vunpack.c.l.b16 %v405
        %v474 = vunpack.c.l.b16 %v406
        %v475 = vunpack.c.l.b16 %v407
        %v476 = vunpack.c.l.b16 %v408
        %v477 = vunpack.c.l.b16 %v409
        %v478 = vunpack.c.l.b16 %v410
        %v479 = vunpack.c.l.b16 %v411
        %v480 = vunpack.c.l.b16 %v412
        %v481 = vunpack.c.l.b16 %v413
        %v482 = vunpack.c.l.b16 %v414
        %v483 = vunpack.c.l.b16 %v415
        %v484 = vunpack.c.l.b16 %v416
        %v485 = vunpack.c.l.b16 %v417
        %v486 = vunpack.c.l.b16 %v418
        %v487 = vunpack.c.l.b16 %v419
        %v488 = vunpack.c.l.b16 %v420
        %v489 = vpack.c.b16 %v458, %v457
        %v490 = vpack.c.b16 %v460, %v459
        %v491 = vpack.c.b16 %v462, %v461
        %v492 = vpack.c.b16 %v464, %v463
        %v493 = vpack.c.b16 %v466, %v465
        %v494 = vpack.c.b16 %v468, %v467
        %v495 = vpack.c.b16 %v470, %v469
        %v496 = vpack.c.b16 %v472, %v471
        %v497 = vpack.c.b16 %v474, %v473
        %v498 = vpack.c.b16 %v476, %v475
        %v499 = vpack.c.b16 %v478, %v477
        %v500 = vpack.c.b16 %v480, %v479
        %v501 = vpack.c.b16 %v482, %v481
        %v502 = vpack.c.b16 %v484, %v483
        %v503 = vpack.c.b16 %v486, %v485
        %v504 = vpack.c.b16 %v488, %v487
        %521 = vmatpush.bf16.msra.mxu0 %v496
        %522 = vmatpush.bf16.msra.mxu0 %v495
        %523 = vmatpush.bf16.msra.mxu0 %v494
        %524 = vmatpush.bf16.msra.mxu0 %v493
        %525 = vmatpush.bf16.msra.mxu0 %v492
        %526 = vmatpush.bf16.msra.mxu0 %v491
        %527 = vmatpush.bf16.msra.mxu0 %v490
        %528 = vmatpush.bf16.msra.mxu0 %v489
        %529 = vmatmul.bf16.gmra.mxu0 %v385
        %v530 = vpop.f32.mrf.mxu0
        %v531 = vadd.f32 %v423, %v530
        %v532 = vpop.f32.mrf.mxu0
        %v533 = vadd.f32 %v423, %v532
        %534 = vmatmul.bf16.gmra.mxu0 %v387
        %v535 = vpop.f32.mrf.mxu0
        %v536 = vadd.f32 %v423, %v535
        %v537 = vpop.f32.mrf.mxu0
        %v538 = vadd.f32 %v423, %v537
        %539 = vdwg.mxu0
        %540 = vmatpush.bf16.msra.mxu0 %v504
        %541 = vmatpush.bf16.msra.mxu0 %v503
        %542 = vmatpush.bf16.msra.mxu0 %v502
        %543 = vmatpush.bf16.msra.mxu0 %v501
        %544 = vmatpush.bf16.msra.mxu0 %v500
        %545 = vmatpush.bf16.msra.mxu0 %v499
        %546 = vmatpush.bf16.msra.mxu0 %v498
        %547 = vmatpush.bf16.msra.mxu0 %v497
        %548 = vmatmul.bf16.gmra.mxu0 %v386
        %v549 = vpop.f32.mrf.mxu0
        %v550 = vadd.f32 %v531, %v549
        %v551 = vpop.f32.mrf.mxu0
        %v552 = vadd.f32 %v533, %v551
        %553 = vmatmul.bf16.gmra.mxu0 %v388
        %v554 = vpop.f32.mrf.mxu0
        %v555 = vadd.f32 %v536, %v554
        %v556 = vpop.f32.mrf.mxu0
        %v557 = vadd.f32 %v538, %v556
        %558 = vdwg.mxu0
        %v559 = vmax.f32 %v550, 0.0
        %v560 = vmax.f32 %v552, 0.0
        %v561 = vmax.f32 %v555, 0.0
        %v562 = vmax.f32 %v557, 0.0
        %v563 = vpack.c.bf16 %v560, %v559
        %v564 = vpack.c.bf16 %v562, %v561
        %v565 = vld [vmem:[#allocation7] sm:$0xf]
        %v566 = vld [vmem:[#allocation7 + $0x4] sm:$0xf]
        %v567 = vld [vmem:[#allocation7 + $0x8] sm:$0xf]
        %v568 = vld [vmem:[#allocation7 + $0xc] sm:$0xf]
        %v569 = vld [vmem:[#allocation7 + $0x10] sm:$0xf]
        %v570 = vld [vmem:[#allocation7 + $0x14] sm:$0xf]
        %v571 = vld [vmem:[#allocation7 + $0x18] sm:$0xf]
        %v572 = vld [vmem:[#allocation7 + $0x1c] sm:$0xf]
        %v573 = vld [vmem:[#allocation7 + $0x20] sm:$0xf]
        %v574 = vld [vmem:[#allocation7 + $0x24] sm:$0xf]
        %v575 = vld [vmem:[#allocation7 + $0x28] sm:$0xf]
        %v576 = vld [vmem:[#allocation7 + $0x2c] sm:$0xf]
        %v577 = vld [vmem:[#allocation7 + $0x30] sm:$0xf]
        %v578 = vld [vmem:[#allocation7 + $0x34] sm:$0xf]
        %v579 = vld [vmem:[#allocation7 + $0x38] sm:$0xf]
        %v580 = vld [vmem:[#allocation7 + $0x3c] sm:$0xf]
        %v581 = vld [vmem:[%s4] sm:$0x1]
        %v583 = vperm.slane %v581, 0
        %v601 = vunpack.c.l.b16 %v565
        %v602 = vunpack.c.l.b16 %v566
        %v603 = vunpack.c.l.b16 %v567
        %v604 = vunpack.c.l.b16 %v568
        %v605 = vunpack.c.l.b16 %v569
        %v606 = vunpack.c.l.b16 %v570
        %v607 = vunpack.c.l.b16 %v571
        %v608 = vunpack.c.l.b16 %v572
        %v609 = vunpack.c.l.b16 %v573
        %v610 = vunpack.c.l.b16 %v574
        %v611 = vunpack.c.l.b16 %v575
        %v612 = vunpack.c.l.b16 %v576
        %v613 = vunpack.c.l.b16 %v577
        %v614 = vunpack.c.l.b16 %v578
        %v615 = vunpack.c.l.b16 %v579
        %v616 = vunpack.c.l.b16 %v580
        %v617 = vpack.c.b16 %v602, %v601
        %v618 = vpack.c.b16 %v604, %v603
        %v619 = vpack.c.b16 %v606, %v605
        %v620 = vpack.c.b16 %v608, %v607
        %v621 = vpack.c.b16 %v610, %v609
        %v622 = vpack.c.b16 %v612, %v611
        %v623 = vpack.c.b16 %v614, %v613
        %v624 = vpack.c.b16 %v616, %v615
        %633 = vmatpush.bf16.msra.mxu0 %v624
        %634 = vmatpush.bf16.msra.mxu0 %v623
        %635 = vmatpush.bf16.msra.mxu0 %v622
        %636 = vmatpush.bf16.msra.mxu0 %v621
        %637 = vmatpush.bf16.msra.mxu0 %v620
        %638 = vmatpush.bf16.msra.mxu0 %v619
        %639 = vmatpush.bf16.msra.mxu0 %v618
        %640 = vmatpush.bf16.msra.mxu0 %v617
        %641 = vmatmul.bf16.gmra.mxu0 %v563
        %v642 = vpop.f32.mrf.mxu0
        %v643 = vadd.f32 %v583, %v642
        %v644 = vpop.f32.mrf.mxu0
        %v645 = vadd.f32 %v583, %v644
        %646 = vmatmul.bf16.gmra.mxu0 %v564
        %v647 = vpop.f32.mrf.mxu0
        %v648 = vadd.f32 %v583, %v647
        %v649 = vpop.f32.mrf.mxu0
        %v650 = vadd.f32 %v583, %v649
        %651 = vdwg.mxu0
        %v652 = vlaneseq
        %v653 = vand.u32 %v652, 127
        %vm654 = vcmp.lt.s32.totalorder %v653, 64
        %v655 = vsel %vm654, 1, 0
        %v656 = vcvt.s32.f32 %v655
        %657 = vadd.xlane.f32.xlu0 %v643
        %v658 = vpop.xlane.xlu0 %657
        %659 = vadd.xlane.f32.xlu0 %v645
        %v660 = vpop.xlane.xlu0 %659
        %661 = vadd.xlane.f32.xlu0 %v648
        %v662 = vpop.xlane.xlu0 %661
        %663 = vadd.xlane.f32.xlu0 %v650
        %v664 = vpop.xlane.xlu0 %663
        %v665 = vmul.f32 %v658, 0.015625
        %v666 = vmul.f32 %v660, 0.015625
        %v667 = vmul.f32 %v662, 0.015625
        %v668 = vmul.f32 %v664, 0.015625
        %v669 = vsub.f32 %v643, %v665
        %v670 = vsub.f32 %v645, %v666
        %v671 = vsub.f32 %v648, %v667
        %v672 = vsub.f32 %v650, %v668
        %v673 = vmul.f32 %v669, %v656
        %v674 = vmul.f32 %v670, %v656
        %v675 = vmul.f32 %v671, %v656
        %v676 = vmul.f32 %v672, %v656
        %v677 = vmul.f32 %v673, %v673
        %v678 = vmul.f32 %v674, %v674
        %v679 = vmul.f32 %v675, %v675
        %v680 = vmul.f32 %v676, %v676
        %681 = vadd.xlane.f32.xlu0 %v677
        %v682 = vpop.xlane.xlu0 %681
        %683 = vadd.xlane.f32.xlu0 %v678
        %v684 = vpop.xlane.xlu0 %683
        %685 = vadd.xlane.f32.xlu0 %v679
        %v686 = vpop.xlane.xlu0 %685
        %687 = vadd.xlane.f32.xlu0 %v680
        %v688 = vpop.xlane.xlu0 %687
        %v689 = vmul.f32 %v682, 0.015625
        %v690 = vmul.f32 %v684, 0.015625
        %v691 = vmul.f32 %v686, 0.015625
        %v692 = vmul.f32 %v688, 0.015625
        %v693 = vadd.f32 %v689, 1e-05
        %v694 = vadd.f32 %v690, 1e-05
        %v695 = vadd.f32 %v691, 1e-05
        %v696 = vadd.f32 %v692, 1e-05
        %v697 = vrsqrt.pop %v693
        %v698 = vmul.f32 %v697, %v693
        %v699 = vmul.f32 %v698, %v697
        %v700 = vmul.f32 0.5, %v699
        %v701 = vsub.f32 1.5, %v700
        %v702 = vmul.f32 %v697, %v701
        %vm703 = vweird.f32 %v693
        %vm704 = vweird.f32 %v697
        %vm705 = vmor %vm703, %vm704
        %v706 = vsel %vm705, %v697, %v702
        %v707 = vrsqrt.pop %v694
        %v708 = vmul.f32 %v707, %v694
        %v709 = vmul.f32 %v708, %v707
        %v710 = vmul.f32 0.5, %v709
        %v711 = vsub.f32 1.5, %v710
        %v712 = vmul.f32 %v707, %v711
        %vm713 = vweird.f32 %v694
        %vm714 = vweird.f32 %v707
        %vm715 = vmor %vm713, %vm714
        %v716 = vsel %vm715, %v707, %v712
        %v717 = vrsqrt.pop %v695
        %v718 = vmul.f32 %v717, %v695
        %v719 = vmul.f32 %v718, %v717
        %v720 = vmul.f32 0.5, %v719
        %v721 = vsub.f32 1.5, %v720
        %v722 = vmul.f32 %v717, %v721
        %vm723 = vweird.f32 %v695
        %vm724 = vweird.f32 %v717
        %vm725 = vmor %vm723, %vm724
        %v726 = vsel %vm725, %v717, %v722
        %v727 = vrsqrt.pop %v696
        %v728 = vmul.f32 %v727, %v696
        %v729 = vmul.f32 %v728, %v727
        %v730 = vmul.f32 0.5, %v729
        %v731 = vsub.f32 1.5, %v730
        %v732 = vmul.f32 %v727, %v731
        %vm733 = vweird.f32 %v696
        %vm734 = vweird.f32 %v727
        %vm735 = vmor %vm733, %vm734
        %v736 = vsel %vm735, %v727, %v732
        %v737 = vmul.f32 %v673, %v706
        %v738 = vmul.f32 %v674, %v716
        %v739 = vmul.f32 %v675, %v726
        %v740 = vmul.f32 %v676, %v736
        %v741 = vld [vmem:[%s5] sm:$0x1]
        %v743 = vperm.slane %v741, 0
        %v745 = vmul.f32 %v737, %v743
        %v746 = vmul.f32 %v738, %v743
        %v747 = vmul.f32 %v739, %v743
        %v748 = vmul.f32 %v740, %v743
        %v749 = vld [vmem:[%s6] sm:$0x1]
        %v751 = vperm.slane %v749, 0
        %v753 = vadd.f32 %v745, %v751
        %v754 = vadd.f32 %v746, %v751
        %v755 = vadd.f32 %v747, %v751
        %v756 = vadd.f32 %v748, %v751
        %v757 = vmax.f32 %v753, 0.0
        %v758 = vmax.f32 %v754, 0.0
        %v759 = vmax.f32 %v755, 0.0
        %v760 = vmax.f32 %v756, 0.0
        %761 = vst [vmem:[%s370] sm:$0xff] %v757
        %762 = vst [vmem:[%s370 + $0x8] sm:$0xff] %v758
        %763 = vst [vmem:[%s370 + $0x10] sm:$0xff] %v759
        %764 = vst [vmem:[%s370 + $0x18] sm:$0xff] %v760
        %s765 = sand.u32 %s212, 1
        %s766 = scalar_lea.sflag [#allocation4], %s765
        %s767 = sand.u32 %s212, 1
        %s768 = smul.addr %s767, 32
        %s769 = scalar_lea.vmem [#allocation8], %s768
        // Predicated region
        $region61: #{tpu_custom_call.1} parent=47 // pred_check
          %p770 = pneg %p222
        $region62: #{tpu_custom_call.1} parent=47 // pred_check_branch
          %772 = sbr.rel (%p770) target = $region64
        $region63: #{tpu_custom_call.1} parent=47 // pred_region
          %s773 = smul.u32 4, %s29
          %775 = vsyncadd %s766, 0
          %s776 = smul.addr %s773, 8
          %s777 = scalar_lea.hbm %s7, %s776
          %s778 = sshll.u32 %s769, 4
          %s779 = int_to_ptr.vmem [resolvable:$true] %s778
          %s780 = sshll.u32 %s777, 4
          %s781 = int_to_ptr.hbm [resolvable:$true] %s780
          %786 = dma.vmem_to_hbm [thread:$0]  %s779, 512, %s781, %s766, 128, 128, 8
        $region64: #{tpu_custom_call.1} parent=47 // pred_fallthru
          _
      $region48: #{tpu_custom_call.1} parent=5 // pred_fallthru
        _
      %p787 = scmp.le.s32.totalorder 2, %s20
      // Predicated region
      $region65: #{tpu_custom_call.1} parent=5 // pred_check
        %p788 = pneg %p787
      $region66: #{tpu_custom_call.1} parent=5 // pred_check_branch
        %790 = sbr.rel (%p788) target = $region68
      $region67: #{tpu_custom_call.1} parent=5 // pred_region
        %s791 = ssub.s32 %s20, 2
        // Predicated region
        $region69: #{tpu_custom_call.1} parent=67 // pred_check
          %p792 = pneg %p228
        $region70: #{tpu_custom_call.1} parent=67 // pred_check_branch
          %794 = sbr.rel (%p792) target = $region72
        $region71: #{tpu_custom_call.1} parent=67 // pred_region
          %s795 = sand.u32 %s213, 1
          %s796 = scalar_lea.sflag [#allocation4], %s795
          %s797 = sand.u32 %s213, 1
          %s798 = smul.addr %s797, 32
          %s799 = scalar_lea.vmem [#allocation8], %s798
          %801 = dma.done %s796, 512
        $region72: #{tpu_custom_call.1} parent=67 // pred_fallthru
          _
      $region68: #{tpu_custom_call.1} parent=5 // pred_fallthru
        _
    $region6: #{tpu_custom_call.1} parent=1 // loop_footer
      %s24 = sadd.s32 1, %s20
    $region7: #{tpu_custom_call.1} parent=1 // loop_footer_branch
      %19 = sbr.rel target = $region3
    $region8: #{tpu_custom_call.1} parent=1 // loop_exit
      _
    %802 = vsyncpa [#allocation3], 1
    %s803 = scalar_lea.sflag [#allocation3], 1
    %804 = vsyncpa %s803, 1
    %805 = vsyncpa [#allocation6], 1
    %806 = vsyncpa [#allocation4], 1
    %s807 = scalar_lea.sflag [#allocation4], 1
    %808 = vsyncpa %s807, 1

</llo_original>
